<compile_context>
chip_gen: v7x
topology: tpu7x:2x2x1
jax: 0.10.0
libtpu: 0.0.40
codegen_flags: <defaults>
</compile_context>

<pallas_src>
import functools

import jax
import jax.numpy as jnp
from jax.experimental import pallas as pl
from jax.experimental.pallas import tpu as pltpu


# ------------------------------- kernel --------------------------------------
def _mlp_kernel(x_ref, *refs, num_layers):
    """refs = (w_0, b_0, w_1, b_1, ..., w_{L-1}, b_{L-1}, out_ref)."""
    out_ref = refs[-1]
    h = x_ref[...]
    for i in range(num_layers):
        w = refs[2 * i][...]
        b = refs[2 * i + 1][...]
        h = jax.lax.dot_general(
            h, w, (((1,), (0,)), ((), ())),
            preferred_element_type=jnp.float32) + b
        if i < num_layers - 1:           # ReLU on every layer except the last
            h = jnp.maximum(h, 0.0)
    out_ref[...] = h.astype(out_ref.dtype)


# ------------------------------- wrapper --------------------------------------
def mlp_forward(x, weights, biases, *, block_rows=256):
    """Pallas MLP forward.

    x:       (..., input_dim) float32
    weights: list of (in_i, out_i) matrices (torch Linear.weight transposed)
    biases:  list of (out_i,) vectors
    """
    num_layers = len(weights)
    assert len(biases) == num_layers

    orig_lead = x.shape[:-1]
    in_dim = x.shape[-1]
    out_dim = weights[-1].shape[1]

    rows = 1
    for d in orig_lead:
        rows *= d
    x2 = x.reshape(rows, in_dim)

    # Row tile: multiple of 8 (sublane), capped at block_rows; pad rows to a multiple.
    tr = min(block_rows, max(8, ((rows + 7) // 8) * 8))
    padded_rows = pl.cdiv(rows, tr) * tr
    if padded_rows != rows:
        x2 = jnp.pad(x2, ((0, padded_rows - rows), (0, 0)))

    grid = (padded_rows // tr,)

    in_specs = [pl.BlockSpec((tr, in_dim), lambda i: (i, 0))]
    args = [x2]
    for w, b in zip(weights, biases):
        b2 = b.reshape(1, -1)
        in_specs.append(pl.BlockSpec(w.shape, lambda i: (0, 0)))   # weight: reused every tile
        in_specs.append(pl.BlockSpec(b2.shape, lambda i: (0, 0)))  # bias row
        args.append(w)
        args.append(b2)

    out = pl.pallas_call(
        functools.partial(_mlp_kernel, num_layers=num_layers),
        grid=grid,
        out_shape=jax.ShapeDtypeStruct((padded_rows, out_dim), x.dtype),
        in_specs=in_specs,
        out_specs=pl.BlockSpec((tr, out_dim), lambda i: (i, 0)),
        compiler_params=pltpu.CompilerParams(
            dimension_semantics=("parallel",),
            vmem_limit_bytes=16 * 1024 * 1024),
    )(*args)

    out = out[:rows]
    return out.reshape(*orig_lead, out_dim)


# --------------------------- pure-JAX reference --------------------------------
def mlp_reference(x, weights, biases):
    num_layers = len(weights)
    h = x
    for i, (w, b) in enumerate(zip(weights, biases)):
        h = h @ w + b
        if i < num_layers - 1:
            h = jnp.maximum(h, 0.0)
    return h


# --------------------------------- main ----------------------------------------
if __name__ == "__main__":
    # Shapes consistent with DynamicMDETR's bbox_embed = MLP(hidden_dim, hidden_dim, 4, 3):
    #   input_dim = hidden_dim = 32, output_dim = 4, num_layers = 3,
    #   applied to a (batch=2, seq=8, 32) activation tensor.
    INPUT_DIM = 32
    HIDDEN_DIM = 32
    OUTPUT_DIM = 4
    NUM_LAYERS = 3
    BATCH = 2
    SEQ = 8

    key = jax.random.PRNGKey(0)
    keys = jax.random.split(key, 2 * NUM_LAYERS + 1)

    dims = [INPUT_DIM] + [HIDDEN_DIM] * (NUM_LAYERS - 1) + [OUTPUT_DIM]
    weights = []
    biases = []
    for i in range(NUM_LAYERS):
        weights.append(0.05 * jax.random.normal(keys[2 * i], (dims[i], dims[i + 1]), jnp.float32))
        biases.append(0.01 * jax.random.normal(keys[2 * i + 1], (dims[i + 1],), jnp.float32))

    x = jax.random.normal(keys[-1], (BATCH, SEQ, INPUT_DIM), jnp.float32)

    forward = jax.jit(lambda xx: mlp_forward(xx, weights, biases))
    y = jax.block_until_ready(forward(x))

    assert y.shape == (BATCH, SEQ, OUTPUT_DIM)
    assert bool(jnp.all(jnp.isfinite(y)))

    y_ref = mlp_reference(x, weights, biases)
    assert bool(jnp.allclose(y, y_ref, atol=1e-5, rtol=1e-5))

    print("KERNEL_OK")
</pallas_src>

<mosaic_0001>
module attributes {stable_mosaic.version = 11 : i64} {
  func.func @_mlp_kernel(%arg0: i32, %arg1: memref<16x32xf32, #tpu.memory_space<vmem>>, %arg2: memref<32x32xf32, #tpu.memory_space<vmem>>, %arg3: memref<1x32xf32, #tpu.memory_space<vmem>>, %arg4: memref<32x32xf32, #tpu.memory_space<vmem>>, %arg5: memref<1x32xf32, #tpu.memory_space<vmem>>, %arg6: memref<32x4xf32, #tpu.memory_space<vmem>>, %arg7: memref<1x4xf32, #tpu.memory_space<vmem>>, %arg8: memref<16x4xf32, #tpu.memory_space<vmem>>) attributes {dimension_semantics = [#tpu.dimension_semantics<parallel>], iteration_bounds = array<i64: 1>, scalar_prefetch = 0 : i64, scratch_operands = 0 : i64, tpu.core_type = #tpu.core_type<tc>, window_params = [{transform_indices = @transform_0, window_bounds = array<i64: 16, 32>}, {pipeline_mode = #tpu.pipeline_mode<synchronous>, transform_indices = @transform_1, window_bounds = array<i64: 32, 32>}, {pipeline_mode = #tpu.pipeline_mode<synchronous>, transform_indices = @transform_2, window_bounds = array<i64: 1, 32>}, {pipeline_mode = #tpu.pipeline_mode<synchronous>, transform_indices = @transform_3, window_bounds = array<i64: 32, 32>}, {pipeline_mode = #tpu.pipeline_mode<synchronous>, transform_indices = @transform_4, window_bounds = array<i64: 1, 32>}, {pipeline_mode = #tpu.pipeline_mode<synchronous>, transform_indices = @transform_5, window_bounds = array<i64: 32, 4>}, {pipeline_mode = #tpu.pipeline_mode<synchronous>, transform_indices = @transform_6, window_bounds = array<i64: 1, 4>}, {transform_indices = @transform_7, window_bounds = array<i64: 16, 4>}]} {
    %c0 = arith.constant 0 : index
    %c0_0 = arith.constant 0 : index
    %0 = vector.load %arg1[%c0, %c0_0] : memref<16x32xf32, #tpu.memory_space<vmem>>, vector<16x32xf32>
    %c0_1 = arith.constant 0 : index
    %c0_2 = arith.constant 0 : index
    %1 = vector.load %arg2[%c0_1, %c0_2] : memref<32x32xf32, #tpu.memory_space<vmem>>, vector<32x32xf32>
    %c0_3 = arith.constant 0 : index
    %c0_4 = arith.constant 0 : index
    %2 = vector.load %arg3[%c0_3, %c0_4] : memref<1x32xf32, #tpu.memory_space<vmem>>, vector<1x32xf32>
    %cst = arith.constant dense<0.000000e+00> : vector<16x32xf32>
    %3 = tpu.matmul %0, %1, %cst {dimension_numbers = #tpu.dot_dimension_numbers<[1], [0], [0], [1], [0, 0, 1, 1], [], []>} : vector<16x32xf32>, vector<32x32xf32>, vector<16x32xf32> -> vector<16x32xf32>
    %4 = vector.broadcast %2 : vector<1x32xf32> to vector<16x32xf32>
    %5 = arith.addf %3, %4 : vector<16x32xf32>
    %cst_5 = arith.constant 0.000000e+00 : f32
    %6 = vector.broadcast %cst_5 : f32 to vector<16x32xf32>
    %7 = arith.maximumf %5, %6 : vector<16x32xf32>
    %c0_6 = arith.constant 0 : index
    %c0_7 = arith.constant 0 : index
    %8 = vector.load %arg4[%c0_6, %c0_7] : memref<32x32xf32, #tpu.memory_space<vmem>>, vector<32x32xf32>
    %c0_8 = arith.constant 0 : index
    %c0_9 = arith.constant 0 : index
    %9 = vector.load %arg5[%c0_8, %c0_9] : memref<1x32xf32, #tpu.memory_space<vmem>>, vector<1x32xf32>
    %cst_10 = arith.constant dense<0.000000e+00> : vector<16x32xf32>
    %10 = tpu.matmul %7, %8, %cst_10 {dimension_numbers = #tpu.dot_dimension_numbers<[1], [0], [0], [1], [0, 0, 1, 1], [], []>} : vector<16x32xf32>, vector<32x32xf32>, vector<16x32xf32> -> vector<16x32xf32>
    %11 = vector.broadcast %9 : vector<1x32xf32> to vector<16x32xf32>
    %12 = arith.addf %10, %11 : vector<16x32xf32>
    %cst_11 = arith.constant 0.000000e+00 : f32
    %13 = vector.broadcast %cst_11 : f32 to vector<16x32xf32>
    %14 = arith.maximumf %12, %13 : vector<16x32xf32>
    %c0_12 = arith.constant 0 : index
    %c0_13 = arith.constant 0 : index
    %15 = vector.load %arg6[%c0_12, %c0_13] : memref<32x4xf32, #tpu.memory_space<vmem>>, vector<32x4xf32>
    %c0_14 = arith.constant 0 : index
    %c0_15 = arith.constant 0 : index
    %16 = vector.load %arg7[%c0_14, %c0_15] : memref<1x4xf32, #tpu.memory_space<vmem>>, vector<1x4xf32>
    %cst_16 = arith.constant dense<0.000000e+00> : vector<16x4xf32>
    %17 = tpu.matmul %14, %15, %cst_16 {dimension_numbers = #tpu.dot_dimension_numbers<[1], [0], [0], [1], [0, 0, 1, 1], [], []>} : vector<16x32xf32>, vector<32x4xf32>, vector<16x4xf32> -> vector<16x4xf32>
    %18 = vector.broadcast %16 : vector<1x4xf32> to vector<16x4xf32>
    %19 = arith.addf %17, %18 : vector<16x4xf32>
    %c0_17 = arith.constant 0 : index
    %c0_18 = arith.constant 0 : index
    %20 = vector.load %arg8[%c0_17, %c0_18] : memref<16x4xf32, #tpu.memory_space<vmem>>, vector<16x4xf32>
    tpu.vector_store %arg8[%c0_17, %c0_18], %19 {strides = array<i32>} : memref<16x4xf32, #tpu.memory_space<vmem>>, vector<16x4xf32>,
    return
  }
  func.func @transform_0(%arg0: i32) -> (i32, i32) {
    %c0_i32 = arith.constant 0 : i32
    %c0_i32_0 = arith.constant 0 : i32
    return %arg0, %c0_i32 : i32, i32
  }
  func.func @transform_1(%arg0: i32) -> (i32, i32) {
    %c0_i32 = arith.constant 0 : i32
    %c0_i32_0 = arith.constant 0 : i32
    %c0_i32_1 = arith.constant 0 : i32
    return %c0_i32, %c0_i32_0 : i32, i32
  }
  func.func @transform_2(%arg0: i32) -> (i32, i32) {
    %c0_i32 = arith.constant 0 : i32
    %c0_i32_0 = arith.constant 0 : i32
    %c0_i32_1 = arith.constant 0 : i32
    return %c0_i32, %c0_i32_0 : i32, i32
  }
  func.func @transform_3(%arg0: i32) -> (i32, i32) {
    %c0_i32 = arith.constant 0 : i32
    %c0_i32_0 = arith.constant 0 : i32
    %c0_i32_1 = arith.constant 0 : i32
    return %c0_i32, %c0_i32_0 : i32, i32
  }
  func.func @transform_4(%arg0: i32) -> (i32, i32) {
    %c0_i32 = arith.constant 0 : i32
    %c0_i32_0 = arith.constant 0 : i32
    %c0_i32_1 = arith.constant 0 : i32
    return %c0_i32, %c0_i32_0 : i32, i32
  }
  func.func @transform_5(%arg0: i32) -> (i32, i32) {
    %c0_i32 = arith.constant 0 : i32
    %c0_i32_0 = arith.constant 0 : i32
    %c0_i32_1 = arith.constant 0 : i32
    return %c0_i32, %c0_i32_0 : i32, i32
  }
  func.func @transform_6(%arg0: i32) -> (i32, i32) {
    %c0_i32 = arith.constant 0 : i32
    %c0_i32_0 = arith.constant 0 : i32
    %c0_i32_1 = arith.constant 0 : i32
    return %c0_i32, %c0_i32_0 : i32, i32
  }
  func.func @transform_7(%arg0: i32) -> (i32, i32) {
    %c0_i32 = arith.constant 0 : i32
    %c0_i32_0 = arith.constant 0 : i32
    return %arg0, %c0_i32 : i32, i32
  }
}

</mosaic_0001>

<llo_original>
// kernel: _lambda_.1
$region0: #{_lambda_.1}
  #allocation0 [shape = 'u32[]', space=smem, size = 0x4, offset = 0x4, fixed_abs, tag = 'smem constant byte address 0x4 - core index']
  #allocation1 [shape = 'u32[144,128]{1,0:T(1,128)}', space=vmem, size = 0x12000, scoped, tag = 'internal scratch']
  %s0 = inlined_call_operand.hbm [shape: f32[16,32], index: 0, kind: input, shape index: {}]
  %s1 = inlined_call_operand.hbm [shape: f32[32,32], index: 1, kind: input, shape index: {}]
  %s2 = inlined_call_operand.vmem [shape: f32[1,32], index: 2, kind: input, shape index: {}]
  %s3 = inlined_call_operand.hbm [shape: f32[32,32], index: 3, kind: input, shape index: {}]
  %s4 = inlined_call_operand.vmem [shape: f32[1,32], index: 4, kind: input, shape index: {}]
  %s5 = inlined_call_operand.hbm [shape: f32[32,4], index: 5, kind: input, shape index: {}]
  %s6 = inlined_call_operand.vmem [shape: f32[1,4], index: 6, kind: input, shape index: {}]
  %s7 = inlined_call_operand.vmem [shape: f32[16,4], index: 7, kind: output, shape index: {}]
  %s8 = sld [smem:[#allocation0]]
  $region54: #{_lambda_.1} parent=0
    _
  %s10 = ssub.s32 1, %s8
  %s11 = scalar_select 0, %s10, %s8
  $region1: #{_lambda_.1} parent=0
    #allocation2 [shape = 'u8[8192]{0}', space=vmem, size = 0x2000, scoped, tag = 'input window, operand 0, single buffered']
    #allocation3 [shape = 's32[1]{0}', space=sflag, size = 0x4, scoped, tag = 'scoped memory for _lambda_.1']
    #allocation4 [shape = 'u8[16384]{0}', space=vmem, size = 0x4000, scoped, tag = 'input window, operand 1, single buffered']
    #allocation5 [shape = 's32[1]{0}', space=sflag, size = 0x4, scoped, tag = 'scoped memory for _lambda_.1']
    #allocation6 [shape = 'u8[16384]{0}', space=vmem, size = 0x4000, scoped, tag = 'input window, operand 3, single buffered']
    #allocation7 [shape = 'u8[16384]{0}', space=vmem, size = 0x4000, scoped, tag = 'input window, operand 5, single buffered']
    #allocation8 [shape = 's32[1]{0}', space=sflag, size = 0x4, scoped, tag = 'scoped memory for _lambda_.1']
    %12 = vsyncpa [#allocation3], 0
    %13 = vsyncpa [#allocation5], 0
    %14 = vsyncpa [#allocation8], 0
    // Predicated region
    $region2: #{_lambda_.1} parent=1 // pred_check
      _
    $region3: #{_lambda_.1} parent=1 // pred_check_branch
      %16 = sbr.rel (0) target = $region5
    $region4: #{_lambda_.1} parent=1 // pred_region
      %s18 = ssub.s32 256, 256
      %19 = vsyncadd [#allocation3], %s18
      %s20 = sshll.u32 [#allocation2], 4
      %s21 = int_to_ptr.vmem [resolvable:$true] %s20
      %26 = dma.hbm_to_vmem [thread:$0]  %s0, 256, %s21, [#allocation3], 128, 128, 8
    $region5: #{_lambda_.1} parent=1 // pred_fallthru
      _
    // Predicated region
    $region6: #{_lambda_.1} parent=1 // pred_check
      _
    $region7: #{_lambda_.1} parent=1 // pred_check_branch
      %28 = sbr.rel (0) target = $region9
    $region8: #{_lambda_.1} parent=1 // pred_region
      %s30 = ssub.s32 512, 512
      %31 = vsyncadd [#allocation5], %s30
      %s32 = sshll.u32 [#allocation4], 4
      %s33 = int_to_ptr.vmem [resolvable:$true] %s32
      %38 = dma.hbm_to_vmem [thread:$0]  %s1, 512, %s33, [#allocation5], 128, 128, 8
    $region9: #{_lambda_.1} parent=1 // pred_fallthru
      _
    // Predicated region
    $region10: #{_lambda_.1} parent=1 // pred_check
      _
    $region11: #{_lambda_.1} parent=1 // pred_check_branch
      %40 = sbr.rel (0) target = $region13
    $region12: #{_lambda_.1} parent=1 // pred_region
      _
    $region13: #{_lambda_.1} parent=1 // pred_fallthru
      _
    // Predicated region
    $region14: #{_lambda_.1} parent=1 // pred_check
      _
    $region15: #{_lambda_.1} parent=1 // pred_check_branch
      %42 = sbr.rel (0) target = $region17
    $region16: #{_lambda_.1} parent=1 // pred_region
      %s44 = ssub.s32 512, 512
      %45 = vsyncadd [#allocation5], %s44
      %s46 = sshll.u32 [#allocation6], 4
      %s47 = int_to_ptr.vmem [resolvable:$true] %s46
      %52 = dma.hbm_to_vmem [thread:$0]  %s3, 512, %s47, [#allocation5], 128, 128, 8
    $region17: #{_lambda_.1} parent=1 // pred_fallthru
      _
    // Predicated region
    $region18: #{_lambda_.1} parent=1 // pred_check
      _
    $region19: #{_lambda_.1} parent=1 // pred_check_branch
      %54 = sbr.rel (0) target = $region21
    $region20: #{_lambda_.1} parent=1 // pred_region
      _
    $region21: #{_lambda_.1} parent=1 // pred_fallthru
      _
    // Predicated region
    $region22: #{_lambda_.1} parent=1 // pred_check
      _
    $region23: #{_lambda_.1} parent=1 // pred_check_branch
      %56 = sbr.rel (0) target = $region25
    $region24: #{_lambda_.1} parent=1 // pred_region
      %s58 = ssub.s32 512, 512
      %59 = vsyncadd [#allocation8], %s58
      %s60 = sshll.u32 [#allocation7], 4
      %s61 = int_to_ptr.vmem [resolvable:$true] %s60
      %66 = dma.hbm_to_vmem [thread:$0]  %s5, 512, %s61, [#allocation8], 128, 128, 8
    $region25: #{_lambda_.1} parent=1 // pred_fallthru
      _
    // Predicated region
    $region26: #{_lambda_.1} parent=1 // pred_check
      _
    $region27: #{_lambda_.1} parent=1 // pred_check_branch
      %68 = sbr.rel (0) target = $region29
    $region28: #{_lambda_.1} parent=1 // pred_region
      _
    $region29: #{_lambda_.1} parent=1 // pred_fallthru
      _
    // Predicated region
    $region30: #{_lambda_.1} parent=1 // pred_check
      _
    $region31: #{_lambda_.1} parent=1 // pred_check_branch
      %70 = sbr.rel (0) target = $region33
    $region32: #{_lambda_.1} parent=1 // pred_region
      %71 = dma.done [#allocation3], 256
    $region33: #{_lambda_.1} parent=1 // pred_fallthru
      _
    // Predicated region
    $region34: #{_lambda_.1} parent=1 // pred_check
      _
    $region35: #{_lambda_.1} parent=1 // pred_check_branch
      %73 = sbr.rel (0) target = $region37
    $region36: #{_lambda_.1} parent=1 // pred_region
      %74 = dma.done [#allocation5], 512
    $region37: #{_lambda_.1} parent=1 // pred_fallthru
      _
    // Predicated region
    $region38: #{_lambda_.1} parent=1 // pred_check
      _
    $region39: #{_lambda_.1} parent=1 // pred_check_branch
      %76 = sbr.rel (0) target = $region41
    $region40: #{_lambda_.1} parent=1 // pred_region
      %77 = dma.done [#allocation5], 512
    $region41: #{_lambda_.1} parent=1 // pred_fallthru
      _
    // Predicated region
    $region42: #{_lambda_.1} parent=1 // pred_check
      _
    $region43: #{_lambda_.1} parent=1 // pred_check_branch
      %79 = sbr.rel (0) target = $region45
    $region44: #{_lambda_.1} parent=1 // pred_region
      %80 = dma.done [#allocation8], 512
    $region45: #{_lambda_.1} parent=1 // pred_fallthru
      _
    %v81 = vld [vmem:[#allocation2] sm:$0xff]
    %v82 = vld [vmem:[#allocation2 + $0x8] sm:$0xff]
    %v83 = vld [vmem:[#allocation4] sm:$0xff]
    %v84 = vld [vmem:[#allocation4 + $0x8] sm:$0xff]
    %v85 = vld [vmem:[#allocation4 + $0x10] sm:$0xff]
    %v86 = vld [vmem:[#allocation4 + $0x18] sm:$0xff]
    %v87 = vld [vmem:[%s2] sm:$0x1]
    %v89 = vlaneseq
    %v90 = vshrl.u32 %v89, 7
    %v91 = vsub.s32 0, %v90
    %v92 = vrot.slane %v87, %v91
    %vm94 = vcmask 261120
    %v96 = vsel %vm94, %v81, 0
    %v99 = vsel %vm94, %v82, 0
    %101 = vmatprep.subr.mxu0 0.0
    %102 = vmatpush1.msra.mxu0 %v83
    %103 = vmatprep.subr.mxu0 0.0
    %104 = vmatpush1.msra.mxu0 %v84
    %105 = vmatprep.subr.mxu0 0.0
    %106 = vmatpush1.msra.mxu0 %v85
    %107 = vmatprep.subr.mxu0 0.0
    %108 = vmatpush1.msra.mxu0 %v86
    %109 = vmatprep.subr.mxu0 0.0
    %110 = vmatpush1.msra.mxu0 0.0
    %111 = vmatprep.subr.mxu0 0.0
    %112 = vmatpush1.msra.mxu0 0.0
    %113 = vmatprep.subr.mxu0 0.0
    %114 = vmatpush1.msra.mxu0 0.0
    %115 = vmatprep.subr.mxu0 0.0
    %116 = vmatpush1.msra.mxu0 0.0
    %117 = vmatprep.subr.mxu0 0.0
    %118 = vmatpush1.msra.mxu0 0.0
    %119 = vmatprep.subr.mxu0 0.0
    %120 = vmatpush1.msra.mxu0 0.0
    %121 = vmatprep.subr.mxu0 0.0
    %122 = vmatpush1.msra.mxu0 0.0
    %123 = vmatprep.subr.mxu0 0.0
    %124 = vmatpush1.msra.mxu0 0.0
    %125 = vmatprep.subr.mxu0 0.0
    %126 = vmatpush1.msra.mxu0 0.0
    %127 = vmatprep.subr.mxu0 0.0
    %128 = vmatpush1.msra.mxu0 0.0
    %129 = vmatprep.subr.mxu0 0.0
    %130 = vmatpush1.msra.mxu0 0.0
    %131 = vmatprep.subr.mxu0 0.0
    %132 = vmatpush1.msra.mxu0 0.0
    %133 = vmatprep.subr.mxu0 0.0
    %134 = vmatpush1.msra.mxu0 0.0
    %135 = vmatprep.subr.mxu0 0.0
    %136 = vmatpush1.msra.mxu0 0.0
    %137 = vmatprep.subr.mxu0 0.0
    %138 = vmatpush1.msra.mxu0 0.0
    %139 = vmatprep.subr.mxu0 0.0
    %140 = vmatpush1.msra.mxu0 0.0
    %141 = vmatprep.subr.mxu0 0.0
    %142 = vmatpush1.msra.mxu0 0.0
    %143 = vmatprep.subr.mxu0 0.0
    %144 = vmatpush1.msra.mxu0 0.0
    %145 = vmatprep.subr.mxu0 0.0
    %146 = vmatpush1.msra.mxu0 0.0
    %147 = vmatprep.subr.mxu0 0.0
    %148 = vmatpush1.msra.mxu0 0.0
    %149 = vmatprep.subr.mxu0 0.0
    %150 = vmatpush1.msra.mxu0 0.0
    %151 = vmatprep.subr.mxu0 0.0
    %152 = vmatpush1.msra.mxu0 0.0
    %153 = vmatprep.subr.mxu0 0.0
    %154 = vmatpush1.msra.mxu0 0.0
    %155 = vmatprep.subr.mxu0 0.0
    %156 = vmatpush1.msra.mxu0 0.0
    %157 = vmatprep.subr.mxu0 0.0
    %158 = vmatpush1.msra.mxu0 0.0
    %159 = vmatprep.subr.mxu0 0.0
    %160 = vmatpush1.msra.mxu0 0.0
    %161 = vmatprep.subr.mxu0 0.0
    %162 = vmatpush1.msra.mxu0 0.0
    %163 = vmatprep.subr.mxu0 0.0
    %164 = vmatpush1.msra.mxu0 0.0
    %165 = vmatprep.mubr.f32.mxu0 0.0
    %166 = vmatmul.mubr.f32.gmra.mrb[0].mxu0 %v96
    %v167 = vpop.f32.mrb[0].mxu0
    %v168 = vadd.f32 %v92, %v167
    %v169 = vpop.f32.mrb[0].mxu0
    %170 = vmatprep.mubr.f32.mxu0 0.0
    %171 = vmatmul.mubr.f32.gmra.mrb[0].mxu0 %v99
    %v172 = vpop.f32.mrb[0].mxu0
    %v173 = vadd.f32 %v92, %v172
    %v174 = vpop.f32.mrb[0].mxu0
    %175 = vdwg.mxu0
    %v176 = vmax.f32 %v168, 0.0
    %v177 = vmax.f32 %v173, 0.0
    %v178 = vld [vmem:[#allocation6] sm:$0xff]
    %v179 = vld [vmem:[#allocation6 + $0x8] sm:$0xff]
    %v180 = vld [vmem:[#allocation6 + $0x10] sm:$0xff]
    %v181 = vld [vmem:[#allocation6 + $0x18] sm:$0xff]
    %v182 = vld [vmem:[%s4] sm:$0x1]
    %v184 = vlaneseq
    %v185 = vshrl.u32 %v184, 7
    %v186 = vsub.s32 0, %v185
    %v187 = vrot.slane %v182, %v186
    %v190 = vsel %vm94, %v176, 0
    %v193 = vsel %vm94, %v177, 0
    %195 = vmatprep.subr.mxu0 0.0
    %196 = vmatpush1.msra.mxu0 %v178
    %197 = vmatprep.subr.mxu0 0.0
    %198 = vmatpush1.msra.mxu0 %v179
    %199 = vmatprep.subr.mxu0 0.0
    %200 = vmatpush1.msra.mxu0 %v180
    %201 = vmatprep.subr.mxu0 0.0
    %202 = vmatpush1.msra.mxu0 %v181
    %203 = vmatprep.subr.mxu0 0.0
    %204 = vmatpush1.msra.mxu0 0.0
    %205 = vmatprep.subr.mxu0 0.0
    %206 = vmatpush1.msra.mxu0 0.0
    %207 = vmatprep.subr.mxu0 0.0
    %208 = vmatpush1.msra.mxu0 0.0
    %209 = vmatprep.subr.mxu0 0.0
    %210 = vmatpush1.msra.mxu0 0.0
    %211 = vmatprep.subr.mxu0 0.0
    %212 = vmatpush1.msra.mxu0 0.0
    %213 = vmatprep.subr.mxu0 0.0
    %214 = vmatpush1.msra.mxu0 0.0
    %215 = vmatprep.subr.mxu0 0.0
    %216 = vmatpush1.msra.mxu0 0.0
    %217 = vmatprep.subr.mxu0 0.0
    %218 = vmatpush1.msra.mxu0 0.0
    %219 = vmatprep.subr.mxu0 0.0
    %220 = vmatpush1.msra.mxu0 0.0
    %221 = vmatprep.subr.mxu0 0.0
    %222 = vmatpush1.msra.mxu0 0.0
    %223 = vmatprep.subr.mxu0 0.0
    %224 = vmatpush1.msra.mxu0 0.0
    %225 = vmatprep.subr.mxu0 0.0
    %226 = vmatpush1.msra.mxu0 0.0
    %227 = vmatprep.subr.mxu0 0.0
    %228 = vmatpush1.msra.mxu0 0.0
    %229 = vmatprep.subr.mxu0 0.0
    %230 = vmatpush1.msra.mxu0 0.0
    %231 = vmatprep.subr.mxu0 0.0
    %232 = vmatpush1.msra.mxu0 0.0
    %233 = vmatprep.subr.mxu0 0.0
    %234 = vmatpush1.msra.mxu0 0.0
    %235 = vmatprep.subr.mxu0 0.0
    %236 = vmatpush1.msra.mxu0 0.0
    %237 = vmatprep.subr.mxu0 0.0
    %238 = vmatpush1.msra.mxu0 0.0
    %239 = vmatprep.subr.mxu0 0.0
    %240 = vmatpush1.msra.mxu0 0.0
    %241 = vmatprep.subr.mxu0 0.0
    %242 = vmatpush1.msra.mxu0 0.0
    %243 = vmatprep.subr.mxu0 0.0
    %244 = vmatpush1.msra.mxu0 0.0
    %245 = vmatprep.subr.mxu0 0.0
    %246 = vmatpush1.msra.mxu0 0.0
    %247 = vmatprep.subr.mxu0 0.0
    %248 = vmatpush1.msra.mxu0 0.0
    %249 = vmatprep.subr.mxu0 0.0
    %250 = vmatpush1.msra.mxu0 0.0
    %251 = vmatprep.subr.mxu0 0.0
    %252 = vmatpush1.msra.mxu0 0.0
    %253 = vmatprep.subr.mxu0 0.0
    %254 = vmatpush1.msra.mxu0 0.0
    %255 = vmatprep.subr.mxu0 0.0
    %256 = vmatpush1.msra.mxu0 0.0
    %257 = vmatprep.subr.mxu0 0.0
    %258 = vmatpush1.msra.mxu0 0.0
    %259 = vmatprep.mubr.f32.mxu0 0.0
    %260 = vmatmul.mubr.f32.gmra.mrb[0].mxu0 %v190
    %v261 = vpop.f32.mrb[0].mxu0
    %v262 = vadd.f32 %v187, %v261
    %v263 = vpop.f32.mrb[0].mxu0
    %264 = vmatprep.mubr.f32.mxu0 0.0
    %265 = vmatmul.mubr.f32.gmra.mrb[0].mxu0 %v193
    %v266 = vpop.f32.mrb[0].mxu0
    %v267 = vadd.f32 %v187, %v266
    %v268 = vpop.f32.mrb[0].mxu0
    %269 = vdwg.mxu0
    %v270 = vmax.f32 %v262, 0.0
    %v271 = vmax.f32 %v267, 0.0
    %v272 = vld [vmem:[#allocation7] sm:$0xff]
    %v273 = vld [vmem:[#allocation7 + $0x8] sm:$0xff]
    %v274 = vld [vmem:[#allocation7 + $0x10] sm:$0xff]
    %v275 = vld [vmem:[#allocation7 + $0x18] sm:$0xff]
    %v276 = vld [vmem:[%s6] sm:$0x1]
    %v278 = vlaneseq
    %v279 = vshrl.u32 %v278, 7
    %v280 = vsub.s32 0, %v279
    %v281 = vrot.slane %v276, %v280
    %v284 = vsel %vm94, %v270, 0
    %v287 = vsel %vm94, %v271, 0
    %289 = vmatprep.subr.mxu0 0.0
    %290 = vmatpush1.msra.mxu0 %v272
    %291 = vmatprep.subr.mxu0 0.0
    %292 = vmatpush1.msra.mxu0 %v273
    %293 = vmatprep.subr.mxu0 0.0
    %294 = vmatpush1.msra.mxu0 %v274
    %295 = vmatprep.subr.mxu0 0.0
    %296 = vmatpush1.msra.mxu0 %v275
    %297 = vmatprep.subr.mxu0 0.0
    %298 = vmatpush1.msra.mxu0 0.0
    %299 = vmatprep.subr.mxu0 0.0
    %300 = vmatpush1.msra.mxu0 0.0
    %301 = vmatprep.subr.mxu0 0.0
    %302 = vmatpush1.msra.mxu0 0.0
    %303 = vmatprep.subr.mxu0 0.0
    %304 = vmatpush1.msra.mxu0 0.0
    %305 = vmatprep.subr.mxu0 0.0
    %306 = vmatpush1.msra.mxu0 0.0
    %307 = vmatprep.subr.mxu0 0.0
    %308 = vmatpush1.msra.mxu0 0.0
    %309 = vmatprep.subr.mxu0 0.0
    %310 = vmatpush1.msra.mxu0 0.0
    %311 = vmatprep.subr.mxu0 0.0
    %312 = vmatpush1.msra.mxu0 0.0
    %313 = vmatprep.subr.mxu0 0.0
    %314 = vmatpush1.msra.mxu0 0.0
    %315 = vmatprep.subr.mxu0 0.0
    %316 = vmatpush1.msra.mxu0 0.0
    %317 = vmatprep.subr.mxu0 0.0
    %318 = vmatpush1.msra.mxu0 0.0
    %319 = vmatprep.subr.mxu0 0.0
    %320 = vmatpush1.msra.mxu0 0.0
    %321 = vmatprep.subr.mxu0 0.0
    %322 = vmatpush1.msra.mxu0 0.0
    %323 = vmatprep.subr.mxu0 0.0
    %324 = vmatpush1.msra.mxu0 0.0
    %325 = vmatprep.subr.mxu0 0.0
    %326 = vmatpush1.msra.mxu0 0.0
    %327 = vmatprep.subr.mxu0 0.0
    %328 = vmatpush1.msra.mxu0 0.0
    %329 = vmatprep.subr.mxu0 0.0
    %330 = vmatpush1.msra.mxu0 0.0
    %331 = vmatprep.subr.mxu0 0.0
    %332 = vmatpush1.msra.mxu0 0.0
    %333 = vmatprep.subr.mxu0 0.0
    %334 = vmatpush1.msra.mxu0 0.0
    %335 = vmatprep.subr.mxu0 0.0
    %336 = vmatpush1.msra.mxu0 0.0
    %337 = vmatprep.subr.mxu0 0.0
    %338 = vmatpush1.msra.mxu0 0.0
    %339 = vmatprep.subr.mxu0 0.0
    %340 = vmatpush1.msra.mxu0 0.0
    %341 = vmatprep.subr.mxu0 0.0
    %342 = vmatpush1.msra.mxu0 0.0
    %343 = vmatprep.subr.mxu0 0.0
    %344 = vmatpush1.msra.mxu0 0.0
    %345 = vmatprep.subr.mxu0 0.0
    %346 = vmatpush1.msra.mxu0 0.0
    %347 = vmatprep.subr.mxu0 0.0
    %348 = vmatpush1.msra.mxu0 0.0
    %349 = vmatprep.subr.mxu0 0.0
    %350 = vmatpush1.msra.mxu0 0.0
    %351 = vmatprep.subr.mxu0 0.0
    %352 = vmatpush1.msra.mxu0 0.0
    %353 = vmatprep.mubr.f32.mxu0 0.0
    %354 = vmatmul.mubr.f32.gmra.mrb[0].mxu0 %v284
    %v355 = vpop.f32.mrb[0].mxu0
    %v356 = vadd.f32 %v281, %v355
    %v357 = vpop.f32.mrb[0].mxu0
    %358 = vmatprep.mubr.f32.mxu0 0.0
    %359 = vmatmul.mubr.f32.gmra.mrb[0].mxu0 %v287
    %v360 = vpop.f32.mrb[0].mxu0
    %v361 = vadd.f32 %v281, %v360
    %v362 = vpop.f32.mrb[0].mxu0
    %363 = vdwg.mxu0
    %vm364 = vcmask 31744
    %365 = vst.msk [vmem:[%s7] sm:$0xff] %vm364, %v356
    %366 = vst.msk [vmem:[%s7 + $0x8] sm:$0xff] %vm364, %v361
    // Predicated region
    $region46: #{_lambda_.1} parent=1 // pred_check
      _
    $region47: #{_lambda_.1} parent=1 // pred_check_branch
      %368 = sbr.rel (0) target = $region49
    $region48: #{_lambda_.1} parent=1 // pred_region
      _
    $region49: #{_lambda_.1} parent=1 // pred_fallthru
      _
    // Predicated region
    $region50: #{_lambda_.1} parent=1 // pred_check
      _
    $region51: #{_lambda_.1} parent=1 // pred_check_branch
      %370 = sbr.rel (0) target = $region53
    $region52: #{_lambda_.1} parent=1 // pred_region
      _
    $region53: #{_lambda_.1} parent=1 // pred_fallthru
      _
    %371 = vsyncpa [#allocation3], 1
    %372 = vsyncpa [#allocation5], 1
    %373 = vsyncpa [#allocation8], 1

</llo_original>
